<compile_context>
chip_gen: v7x
topology: tpu7x:2x2x1
jax: 0.10.0
libtpu: 0.0.40
codegen_flags: <defaults>
</compile_context>

<pallas_src>
import jax
import jax.numpy as jnp
from jax.experimental import pallas as pl
from jax.experimental.pallas import tpu as pltpu

LANE = 128                         # lane width (fast axis)
MAX_BLOCK_BYTES = 2 * 1024 * 1024  # ~2 MiB per block; x2 (in+out) x2 (double
                                   # buffering) = 8 MiB VMEM.


def _mish_kernel(x_ref, o_ref):
    # Compute in f32 (v5e has no bf16 VPU/EUP; for f32 inputs this is a no-op,
    # for bf16 inputs HBM traffic is still the narrow bf16 I/O).
    x = x_ref[...].astype(jnp.float32)
    t = jnp.exp(-jnp.abs(x))          # t in (0, 1] -> bounded intermediates
    t2 = t * t
    two_t = t + t
    pos = x >= 0.0
    num = jnp.where(pos, 1.0 + two_t, two_t + t2)
    den = num + jnp.where(pos, t2 + t2, 2.0)   # den in [1, 5]
    y = x * (num / den)               # exact f32 divide: correctness over the
                                      # approx EUP rcp that failed previously.
    o_ref[...] = y.astype(o_ref.dtype)


def mish(x: jax.Array, *, max_block_bytes: int = MAX_BLOCK_BYTES) -> jax.Array:
    """Elementwise mish; same shape & dtype as the input (any rank)."""
    orig_shape = x.shape
    orig_dtype = x.dtype
    n = x.size
    itemsize = jnp.dtype(orig_dtype).itemsize

    # Sublane alignment for the block's row dim: (8,128) f32, (16,128) bf16, ...
    sub = max(8, 32 // itemsize)

    rows = pl.cdiv(n, LANE)
    padded = rows * LANE

    # Row tile: the whole slab if it fits in one block, otherwise the largest
    # sublane-aligned tile under the byte budget.  The last grid step may be a
    # partial block (Pallas masks the edge writes).
    max_rows = max(sub, (max_block_bytes // (LANE * itemsize)) // sub * sub)
    row_tile = rows if rows <= max_rows else max_rows
    grid = pl.cdiv(rows, row_tile)

    # Only pad / slice when the flat size is not lane-aligned — pad and tail
    # slice are each an extra full HBM pass around a memory-bound op, so skip
    # them for the common aligned case (typical NCHW conv activations).
    needs_pad = padded != n
    flat = jnp.ravel(x)
    if needs_pad:
        flat = jnp.pad(flat, (0, padded - n))
    x2d = flat.reshape(rows, LANE)

    out2d = pl.pallas_call(
        _mish_kernel,
        out_shape=jax.ShapeDtypeStruct((rows, LANE), orig_dtype),
        grid=(grid,),
        in_specs=[pl.BlockSpec((row_tile, LANE), lambda i: (i, 0))],
        out_specs=pl.BlockSpec((row_tile, LANE), lambda i: (i, 0)),
        compiler_params=pltpu.CompilerParams(
            dimension_semantics=("parallel",),
        ),
    )(x2d)

    if needs_pad:
        return out2d.reshape(-1)[:n].reshape(orig_shape)
    return out2d.reshape(orig_shape)


if __name__ == "__main__":
    def ref_mish(v):
        v32 = v.astype(jnp.float32)
        return (v32 * jnp.tanh(jnp.logaddexp(v32, 0.0))).astype(v.dtype)

    key = jax.random.PRNGKey(0)
    k0, k1, k2 = jax.random.split(key, 3)

    # (N, C, H, W) like a typical conv activation — lane-aligned, single block.
    x = jax.random.normal(k0, (2, 4, 16, 16), dtype=jnp.float32) * 3.0
    y = mish(x)
    jax.block_until_ready(y)
    assert y.shape == x.shape and y.dtype == x.dtype
    assert jnp.allclose(y, ref_mish(x), atol=1e-5, rtol=1e-5)

    # Non-lane-aligned shape with large-magnitude values exercises the
    # pad / tail-slice fallback path and the numerics far from zero.
    x2 = jax.random.normal(k1, (2, 3, 5, 7), dtype=jnp.float32) * 10.0
    y2 = mish(x2)
    jax.block_until_ready(y2)
    assert jnp.allclose(y2, ref_mish(x2), atol=1e-5, rtol=1e-5)

    # Multi-step grid with a partial last block, using a small tile override:
    # 2*4*24*24 = 4608 elems -> 36 rows; 16-row tiles -> grid of 3 (16+16+4).
    x3 = jax.random.normal(k2, (2, 4, 24, 24), dtype=jnp.float32) * 5.0
    y3 = mish(x3, max_block_bytes=8 * 1024)
    jax.block_until_ready(y3)
    assert jnp.allclose(y3, ref_mish(x3), atol=1e-5, rtol=1e-5)

    print("KERNEL_OK")
</pallas_src>

<mosaic_0001>
module attributes {stable_mosaic.version = 11 : i64} {
  func.func @_mish_kernel(%arg0: i32, %arg1: memref<16x128xf32, #tpu.memory_space<vmem>>, %arg2: memref<16x128xf32, #tpu.memory_space<vmem>>) attributes {dimension_semantics = [#tpu.dimension_semantics<parallel>], iteration_bounds = array<i64: 1>, scalar_prefetch = 0 : i64, scratch_operands = 0 : i64, tpu.core_type = #tpu.core_type<tc>, window_params = [{transform_indices = @transform_0, window_bounds = array<i64: 16, 128>}, {transform_indices = @transform_1, window_bounds = array<i64: 16, 128>}]} {
    %c0 = arith.constant 0 : index
    %c0_0 = arith.constant 0 : index
    %0 = vector.load %arg1[%c0, %c0_0] : memref<16x128xf32, #tpu.memory_space<vmem>>, vector<16x128xf32>
    %1 = math.absf %0 : vector<16x128xf32>
    %cst = arith.constant 0.000000e+00 : f32
    %2 = vector.broadcast %cst : f32 to vector<16x128xf32>
    %3 = arith.subf %2, %1 : vector<16x128xf32>
    %4 = math.exp %3 : vector<16x128xf32>
    %5 = arith.mulf %4, %4 : vector<16x128xf32>
    %6 = arith.addf %4, %4 : vector<16x128xf32>
    %cst_1 = arith.constant 0.000000e+00 : f32
    %7 = vector.broadcast %cst_1 : f32 to vector<16x128xf32>
    %8 = arith.cmpf oge, %0, %7 : vector<16x128xf32>
    %cst_2 = arith.constant 1.000000e+00 : f32
    %9 = vector.broadcast %cst_2 : f32 to vector<16x128xf32>
    %10 = arith.addf %9, %6 : vector<16x128xf32>
    %11 = arith.addf %6, %5 : vector<16x128xf32>
    %12 = arith.select %8, %10, %11 : vector<16x128xi1>, vector<16x128xf32>
    %13 = arith.addf %5, %5 : vector<16x128xf32>
    %cst_3 = arith.constant 2.000000e+00 : f32
    %14 = vector.broadcast %cst_3 : f32 to vector<16x128xf32>
    %15 = arith.select %8, %13, %14 : vector<16x128xi1>, vector<16x128xf32>
    %16 = arith.addf %12, %15 : vector<16x128xf32>
    %17 = arith.divf %12, %16 : vector<16x128xf32>
    %18 = arith.mulf %0, %17 : vector<16x128xf32>
    %c0_4 = arith.constant 0 : index
    %c0_5 = arith.constant 0 : index
    %19 = vector.load %arg2[%c0_4, %c0_5] : memref<16x128xf32, #tpu.memory_space<vmem>>, vector<16x128xf32>
    tpu.vector_store %arg2[%c0_4, %c0_5], %18 {strides = array<i32>} : memref<16x128xf32, #tpu.memory_space<vmem>>, vector<16x128xf32>,
    return
  }
  func.func @transform_0(%arg0: i32) -> (i32, i32) {
    %c0_i32 = arith.constant 0 : i32
    %c0_i32_0 = arith.constant 0 : i32
    return %arg0, %c0_i32 : i32, i32
  }
  func.func @transform_1(%arg0: i32) -> (i32, i32) {
    %c0_i32 = arith.constant 0 : i32
    %c0_i32_0 = arith.constant 0 : i32
    return %arg0, %c0_i32 : i32, i32
  }
}

</mosaic_0001>

<llo_original>
// kernel: tpu_custom_call.1
$region0: #{tpu_custom_call.1}
  #allocation0 [shape = 'u32[]', space=smem, size = 0x4, offset = 0x4, fixed_abs, tag = 'smem constant byte address 0x4 - core index']
  #allocation1 [shape = 'u32[144,128]{1,0:T(1,128)}', space=vmem, size = 0x12000, scoped, tag = 'internal scratch']
  %s0 = inlined_call_operand.hbm [shape: f32[16,128], index: 0, kind: input, shape index: {}]
  %s1 = inlined_call_operand.hbm [shape: f32[16,128], index: 1, kind: output, shape index: {}]
  %s2 = sld [smem:[#allocation0]]
  $region18: #{tpu_custom_call.1} parent=0
    _
  %s4 = ssub.s32 1, %s2
  %s5 = scalar_select 0, %s4, %s2
  $region1: #{tpu_custom_call.1} parent=0
    #allocation2 [shape = 'u8[8192]{0}', space=vmem, size = 0x2000, scoped, tag = 'input window, operand 0, single buffered']
    #allocation3 [shape = 's32[1]{0}', space=sflag, size = 0x4, scoped, tag = 'scoped memory for tpu_custom_call.1']
    #allocation4 [shape = 's32[1]{0}', space=sflag, size = 0x4, scoped, tag = 'scoped memory for tpu_custom_call.1']
    #allocation5 [shape = 'u8[8192]{0}', space=vmem, size = 0x2000, scoped, tag = 'output window, operand 0, single buffered']
    %6 = vsyncpa [#allocation3], 0
    %7 = vsyncpa [#allocation4], 0
    // Predicated region
    $region2: #{tpu_custom_call.1} parent=1 // pred_check
      _
    $region3: #{tpu_custom_call.1} parent=1 // pred_check_branch
      %9 = sbr.rel (0) target = $region5
    $region4: #{tpu_custom_call.1} parent=1 // pred_region
      %s11 = ssub.s32 256, 256
      %12 = vsyncadd [#allocation3], %s11
      %s13 = sshll.u32 [#allocation2], 4
      %s14 = int_to_ptr.vmem [resolvable:$true] %s13
      %19 = dma.hbm_to_vmem [thread:$0]  %s0, 256, %s14, [#allocation3], 128, 128, 8
    $region5: #{tpu_custom_call.1} parent=1 // pred_fallthru
      _
    // Predicated region
    $region6: #{tpu_custom_call.1} parent=1 // pred_check
      _
    $region7: #{tpu_custom_call.1} parent=1 // pred_check_branch
      %21 = sbr.rel (0) target = $region9
    $region8: #{tpu_custom_call.1} parent=1 // pred_region
      %22 = dma.done [#allocation3], 256
    $region9: #{tpu_custom_call.1} parent=1 // pred_fallthru
      _
    %v23 = vld [vmem:[#allocation2] sm:$0xff]
    %v24 = vld [vmem:[#allocation2 + $0x8] sm:$0xff]
    %v25 = vand.u32 2147483647, %v23
    %v26 = vand.u32 2147483647, %v24
    %v27 = vsub.f32 0.0, %v25
    %v28 = vsub.f32 0.0, %v26
    %v29 = vmul.f32 %v27, 1.442695
    %v30 = vpow.pop %v29
    %v31 = vmul.f32 %v28, 1.442695
    %v32 = vpow.pop %v31
    %v33 = vmul.f32 %v30, %v30
    %v34 = vmul.f32 %v32, %v32
    %v35 = vadd.f32 %v30, %v30
    %v36 = vadd.f32 %v32, %v32
    %vm37 = vcmp.ge.f32.partialorder %v23, 0.0
    %vm38 = vcmp.ge.f32.partialorder %v24, 0.0
    %v39 = vadd.f32 %v35, 1.0
    %v40 = vadd.f32 %v36, 1.0
    %v41 = vadd.f32 %v35, %v33
    %v42 = vadd.f32 %v36, %v34
    %v43 = vsel %vm37, %v39, %v41
    %v44 = vsel %vm38, %v40, %v42
    %v45 = vadd.f32 %v33, %v33
    %v46 = vadd.f32 %v34, %v34
    %v47 = vsel %vm37, %v45, 2.0
    %v48 = vsel %vm38, %v46, 2.0
    %v49 = vadd.f32 %v43, %v47
    %v50 = vadd.f32 %v44, %v48
    %v51 = vrcp.pop %v49
    %v52 = vmul.f32 %v43, %v51
    %v53 = vrcp.pop %v50
    %v54 = vmul.f32 %v44, %v53
    %v55 = vmul.f32 %v23, %v52
    %v56 = vmul.f32 %v24, %v54
    %57 = vst [vmem:[#allocation5] sm:$0xff] %v55
    %58 = vst [vmem:[#allocation5 + $0x8] sm:$0xff] %v56
    // Predicated region
    $region10: #{tpu_custom_call.1} parent=1 // pred_check
      _
    $region11: #{tpu_custom_call.1} parent=1 // pred_check_branch
      %60 = sbr.rel (0) target = $region13
    $region12: #{tpu_custom_call.1} parent=1 // pred_region
      %s62 = ssub.s32 256, 256
      %63 = vsyncadd [#allocation4], %s62
      %s64 = sshll.u32 [#allocation5], 4
      %s65 = int_to_ptr.vmem [resolvable:$true] %s64
      %70 = dma.vmem_to_hbm [thread:$0]  %s65, 256, %s1, [#allocation4], 128, 128, 8
    $region13: #{tpu_custom_call.1} parent=1 // pred_fallthru
      _
    // Predicated region
    $region14: #{tpu_custom_call.1} parent=1 // pred_check
      _
    $region15: #{tpu_custom_call.1} parent=1 // pred_check_branch
      %72 = sbr.rel (0) target = $region17
    $region16: #{tpu_custom_call.1} parent=1 // pred_region
      %73 = dma.done [#allocation4], 256
    $region17: #{tpu_custom_call.1} parent=1 // pred_fallthru
      _
    %74 = vsyncpa [#allocation3], 1
    %75 = vsyncpa [#allocation4], 1

</llo_original>
